<compile_context>
chip_gen: v7x
topology: tpu7x:2x2x1
jax: 0.10.0
libtpu: 0.0.40
codegen_flags: <defaults>
</compile_context>

<pallas_src>
import jax
import jax.numpy as jnp
from jax.experimental import pallas as pl
from jax.experimental.pallas import tpu as pltpu

_SUBLANES = 8


def _sigmoid_kernel(x_ref, o_ref):
    # Elementwise sigmoid on the whole resident VMEM tile (exp on EUP).
    o_ref[...] = jax.nn.sigmoid(x_ref[...])


def sigmoid_pallas(x):
    """Apply sigmoid to an NCHW tensor [N, C, H, W] via a Pallas TPU kernel."""
    n, c, h, w = x.shape
    total = n * c * h * w

    # Present the data as a single 2-D full-array block. Since the block shape
    # equals the array shape, the (8, 128) divisibility constraint does not
    # apply, so no padding or tail slicing is required. Prefer 8 sublane rows
    # when the size allows it so loads/stores use full sublane groups.
    rows = _SUBLANES if total % _SUBLANES == 0 else 1
    cols = total // rows
    x2d = x.reshape(rows, cols)

    out2d = pl.pallas_call(
        _sigmoid_kernel,
        out_shape=jax.ShapeDtypeStruct(x2d.shape, x2d.dtype),
        in_specs=[pl.BlockSpec(memory_space=pltpu.MemorySpace.VMEM)],
        out_specs=pl.BlockSpec(memory_space=pltpu.MemorySpace.VMEM),
        input_output_aliases={0: 0},
    )(x2d)

    return out2d.reshape(n, c, h, w)


if __name__ == "__main__":
    key = jax.random.PRNGKey(0)
    # Matches the module's forward input: torch.randn([1, 1824, 1, 1])
    x584 = jax.random.normal(key, (1, 1824, 1, 1), dtype=jnp.float32)

    # Pure-JAX reference (computed first; x584 itself is never donated).
    ref = jax.nn.sigmoid(x584)

    y = sigmoid_pallas(x584)
    jax.block_until_ready(y)

    assert y.shape == (1, 1824, 1, 1)
    assert jnp.allclose(y, ref, atol=1e-6, rtol=1e-6)

    print("KERNEL_OK")
</pallas_src>

<mosaic_0001>
module attributes {stable_mosaic.version = 11 : i64} {
  func.func @_sigmoid_kernel(%arg0: memref<8x228xf32, #tpu.memory_space<vmem>>, %arg1: memref<8x228xf32, #tpu.memory_space<vmem>>) attributes {dimension_semantics = [], scalar_prefetch = 0 : i64, scratch_operands = 0 : i64, tpu.core_type = #tpu.core_type<tc>} {
    %c0 = arith.constant 0 : index
    %c0_0 = arith.constant 0 : index
    %0 = vector.load %arg0[%c0, %c0_0] : memref<8x228xf32, #tpu.memory_space<vmem>>, vector<8x228xf32>
    %1 = arith.negf %0 : vector<8x228xf32>
    %2 = math.exp %1 : vector<8x228xf32>
    %cst = arith.constant 1.000000e+00 : f32
    %3 = vector.broadcast %cst : f32 to vector<8x228xf32>
    %4 = arith.addf %3, %2 : vector<8x228xf32>
    %5 = arith.divf %3, %4 : vector<8x228xf32>
    %c0_1 = arith.constant 0 : index
    %c0_2 = arith.constant 0 : index
    %6 = vector.load %arg1[%c0_1, %c0_2] : memref<8x228xf32, #tpu.memory_space<vmem>>, vector<8x228xf32>
    tpu.vector_store %arg1[%c0_1, %c0_2], %5 {strides = array<i32>} : memref<8x228xf32, #tpu.memory_space<vmem>>, vector<8x228xf32>,
    return
  }
}

</mosaic_0001>

<llo_original>
// kernel: tpu_custom_call.1
$region0: #{tpu_custom_call.1}
  #allocation0 [shape = 'u32[]', space=smem, size = 0x4, offset = 0x4, fixed_abs, tag = 'smem constant byte address 0x4 - core index']
  #allocation1 [shape = 'u32[144,128]{1,0:T(1,128)}', space=vmem, size = 0x12000, scoped, tag = 'internal scratch']
  %s0 = inlined_call_operand.hbm [shape: f32[8,228], index: 0, kind: input, shape index: {}, may-alias: {0,1}]
  %s1 = inlined_call_operand.hbm [shape: f32[8,228], index: 1, kind: output, shape index: {}, may-alias: {0,1}]
  %s2 = sld [smem:[#allocation0]]
  $region18: #{tpu_custom_call.1} parent=0
    _
  %s4 = ssub.s32 1, %s2
  %s5 = scalar_select 0, %s4, %s2
  $region1: #{tpu_custom_call.1} parent=0
    #allocation2 [shape = 'u8[8192]{0}', space=vmem, size = 0x2000, scoped, tag = 'input window, operand 0, single buffered']
    #allocation3 [shape = 's32[1]{0}', space=sflag, size = 0x4, scoped, tag = 'scoped memory for tpu_custom_call.1']
    #allocation4 [shape = 's32[1]{0}', space=sflag, size = 0x4, scoped, tag = 'scoped memory for tpu_custom_call.1']
    #allocation5 [shape = 'u8[8192]{0}', space=vmem, size = 0x2000, scoped, tag = 'output window, operand 0, single buffered']
    %6 = vsyncpa [#allocation3], 0
    %7 = vsyncpa [#allocation4], 0
    // Predicated region
    $region2: #{tpu_custom_call.1} parent=1 // pred_check
      _
    $region3: #{tpu_custom_call.1} parent=1 // pred_check_branch
      %9 = sbr.rel (0) target = $region5
    $region4: #{tpu_custom_call.1} parent=1 // pred_region
      %s11 = ssub.s32 256, 256
      %12 = vsyncadd [#allocation3], %s11
      %s14 = sshll.u32 [#allocation2], 4
      %s15 = int_to_ptr.vmem [resolvable:$true] %s14
      %17 = dma.hbm_to_vmem [thread:$0]  %s0, 256, %s15, [#allocation3]
    $region5: #{tpu_custom_call.1} parent=1 // pred_fallthru
      _
    // Predicated region
    $region6: #{tpu_custom_call.1} parent=1 // pred_check
      _
    $region7: #{tpu_custom_call.1} parent=1 // pred_check_branch
      %19 = sbr.rel (0) target = $region9
    $region8: #{tpu_custom_call.1} parent=1 // pred_region
      %20 = dma.done [#allocation3], 256
    $region9: #{tpu_custom_call.1} parent=1 // pred_fallthru
      _
    %v21 = vld [vmem:[#allocation2] sm:$0xff]
    %v22 = vld [vmem:[#allocation2 + $0x8] sm:$0xff]
    %v23 = vxor.u32 %v21, 2147483648
    %v24 = vxor.u32 %v22, 2147483648
    %v25 = vmul.f32 %v23, 1.442695
    %v26 = vpow.pop %v25
    %v27 = vmul.f32 %v24, 1.442695
    %v28 = vpow.pop %v27
    %v29 = vadd.f32 %v26, 1.0
    %v30 = vadd.f32 %v28, 1.0
    %v31 = vrcp.pop %v29
    %v32 = vmul.f32 1.0, %v31
    %v33 = vrcp.pop %v30
    %v34 = vmul.f32 1.0, %v33
    %35 = vst [vmem:[#allocation5] sm:$0xff] %v32
    %vm36 = vcmask 818176
    %37 = vst.msk [vmem:[#allocation5 + $0x8] sm:$0xff] %vm36, %v34
    // Predicated region
    $region10: #{tpu_custom_call.1} parent=1 // pred_check
      _
    $region11: #{tpu_custom_call.1} parent=1 // pred_check_branch
      %39 = sbr.rel (0) target = $region13
    $region12: #{tpu_custom_call.1} parent=1 // pred_region
      %s41 = ssub.s32 256, 256
      %42 = vsyncadd [#allocation4], %s41
      %s44 = sshll.u32 [#allocation5], 4
      %s45 = int_to_ptr.vmem [resolvable:$true] %s44
      %47 = dma.vmem_to_hbm [thread:$0]  %s45, 256, %s1, [#allocation4]
    $region13: #{tpu_custom_call.1} parent=1 // pred_fallthru
      _
    // Predicated region
    $region14: #{tpu_custom_call.1} parent=1 // pred_check
      _
    $region15: #{tpu_custom_call.1} parent=1 // pred_check_branch
      %49 = sbr.rel (0) target = $region17
    $region16: #{tpu_custom_call.1} parent=1 // pred_region
      %50 = dma.done [#allocation4], 256
    $region17: #{tpu_custom_call.1} parent=1 // pred_fallthru
      _
    %51 = vsyncpa [#allocation3], 1
    %52 = vsyncpa [#allocation4], 1

</llo_original>
